<compile_context>
chip_gen: v7x
topology: tpu7x:2x2x1
jax: 0.10.0
libtpu: 0.0.40
codegen_flags: <defaults>
</compile_context>

<pallas_src>
import jax
import jax.numpy as jnp
from jax.experimental import pallas as pl
from jax.experimental.pallas import tpu as pltpu


def sage_kernel(adj_ref, xk_ref, xr_ref, invdeg_ref, wl_ref, wr_ref, b_ref,
                o_ref, acc_ref):
    """One (node-tile, neighbor/K-tile) step of SAGEConv.

    adj_ref    : [TN, TK]     bf16  adjacency block (rows = this node tile)
    xk_ref     : [TK, Fin]    bf16  neighbor features for this K tile
    xr_ref     : [TN, Fin]    f32   root features for this node tile
    invdeg_ref : [TN, 1]      f32   1 / max(degree, 1)
    wl_ref     : [Fin, Fpad]  f32   W_l (lane-padded)
    wr_ref     : [Fin, Fpad]  f32   W_r (lane-padded)
    b_ref      : [1, Fpad]    f32   bias (lane-padded)
    o_ref      : [TN, Fpad]   f32   output tile
    acc_ref    : [TN, Fin]    f32   VMEM accumulator for sum_j adj_ij * x_j
    """
    k = pl.program_id(1)

    @pl.when(k == 0)
    def _init():
        acc_ref[...] = jnp.zeros_like(acc_ref)

    # Neighbor-sum partial product: native bf16 x bf16 MXU matmul, f32 accum.
    acc_ref[...] += jnp.dot(adj_ref[...], xk_ref[...],
                            preferred_element_type=jnp.float32)

    @pl.when(k == pl.num_programs(1) - 1)
    def _finalize():
        agg = acc_ref[...] * invdeg_ref[...]                 # mean aggregation
        out = jnp.dot(agg, wl_ref[...], preferred_element_type=jnp.float32)
        out = out + jnp.dot(xr_ref[...], wr_ref[...],
                            preferred_element_type=jnp.float32)
        out = out + b_ref[...]
        o_ref[...] = out.astype(o_ref.dtype)


def sage_conv(adj, x, w_l, w_r, b, *, tile_n=None, tile_k=None):
    """SAGEConv forward.

    tile_n: 128 (v5e) / 256 (v6e, v7x -- keep N/tile_n >= 2 for the dual TCs).
    tile_k: as large as divides N, up to ~1024-2048 (contiguous adj DMA runs).
    """
    N, Fin = x.shape
    Fout = w_l.shape[1]
    assert adj.shape == (N, N)

    if tile_n is None:
        tile_n = min(N, 128)
    if tile_k is None:
        tile_k = min(N, 1024)
    assert N % tile_n == 0 and N % tile_k == 0, "pad N to the tile sizes"

    f_pad = ((Fout + 127) // 128) * 128

    # Host-side (XLA) prep: exact 1/deg, lane-padded weights/bias, bf16 streams.
    deg = jnp.sum(adj, axis=-1, keepdims=True)
    inv_deg = (1.0 / jnp.maximum(deg, 1.0)).astype(jnp.float32)      # [N, 1]
    wl_pad = jnp.pad(w_l, ((0, 0), (0, f_pad - Fout))).astype(jnp.float32)
    wr_pad = jnp.pad(w_r, ((0, 0), (0, f_pad - Fout))).astype(jnp.float32)
    b_pad = jnp.pad(jnp.reshape(b, (1, Fout)),
                    ((0, 0), (0, f_pad - Fout))).astype(jnp.float32)
    adj_bf16 = adj.astype(jnp.bfloat16)       # 0/1 is exact in bf16
    xk_bf16 = x.astype(jnp.bfloat16)          # neighbor (re-streamed) operand
    xr_f32 = x.astype(jnp.float32)            # root operand stays exact

    grid = (N // tile_n, N // tile_k)

    # VMEM budget: double-buffered pipeline blocks + resident accumulator.
    vmem_bytes = 2 * (
        tile_n * tile_k * 2          # adj block (bf16)
        + tile_k * Fin * 2           # neighbor x K-tile (bf16)
        + tile_n * Fin * 4           # root x tile (f32)
        + tile_n * 4                 # inv_deg tile
        + 2 * Fin * f_pad * 4        # W_l, W_r
        + f_pad * 4                  # bias
        + tile_n * f_pad * 4         # output tile
    ) + tile_n * Fin * 4             # accumulator scratch
    vmem_limit = max(vmem_bytes + (4 << 20), 16 << 20)

    cost = pl.CostEstimate(
        flops=2 * N * N * Fin + 2 * 2 * N * Fin * f_pad,
        transcendentals=0,
        bytes_accessed=(
            N * N * 2                              # adjacency stream (bf16)
            + (N // tile_n) * N * Fin * 2          # x re-streamed per node tile
            + N * Fin * 4                          # root x
            + N * 4                                # inv_deg
            + 2 * Fin * f_pad * 4 + f_pad * 4      # weights + bias
            + N * f_pad * 4                        # output
        ),
    )

    out_padded = pl.pallas_call(
        sage_kernel,
        out_shape=jax.ShapeDtypeStruct((N, f_pad), jnp.float32),
        grid_spec=pltpu.PrefetchScalarGridSpec(
            num_scalar_prefetch=0,
            grid=grid,
            in_specs=[
                pl.BlockSpec((tile_n, tile_k), lambda i, k: (i, k)),  # adj
                pl.BlockSpec((tile_k, Fin), lambda i, k: (k, 0)),     # x neigh
                pl.BlockSpec((tile_n, Fin), lambda i, k: (i, 0)),     # x root
                pl.BlockSpec((tile_n, 1), lambda i, k: (i, 0)),       # 1/deg
                pl.BlockSpec((Fin, f_pad), lambda i, k: (0, 0)),      # W_l
                pl.BlockSpec((Fin, f_pad), lambda i, k: (0, 0)),      # W_r
                pl.BlockSpec((1, f_pad), lambda i, k: (0, 0)),        # bias
            ],
            out_specs=pl.BlockSpec((tile_n, f_pad), lambda i, k: (i, 0)),
            scratch_shapes=[pltpu.VMEM((tile_n, Fin), jnp.float32)],
        ),
        compiler_params=pltpu.CompilerParams(
            dimension_semantics=("parallel", "arbitrary"),
            vmem_limit_bytes=vmem_limit,
        ),
        cost_estimate=cost,
    )(adj_bf16, xk_bf16, xr_f32, inv_deg, wl_pad, wr_pad, b_pad)

    return out_padded[:, :Fout]


def sage_conv_ref(adj, x, w_l, w_r, b):
    """Full-f32 reference (SAGEConv, mean aggregation)."""
    deg = jnp.maximum(adj.sum(axis=-1, keepdims=True), 1.0)
    agg = (adj @ x) / deg
    return agg @ w_l + x @ w_r + jnp.reshape(b, (1, -1))


if __name__ == "__main__":
    key = jax.random.PRNGKey(0)
    k_adj, k_x, k_wl, k_wr, k_b = jax.random.split(key, 5)

    N, F_IN, F_OUT = 256, 32, 64

    # deterministic synthetic graph: ~10% edge density, no self loops
    adj = (jax.random.uniform(k_adj, (N, N)) < 0.1).astype(jnp.float32)
    adj = adj * (1.0 - jnp.eye(N, dtype=jnp.float32))

    x = jax.random.normal(k_x, (N, F_IN), dtype=jnp.float32)

    # deterministic "glorot-ish" parameter init (synthetic, not a checkpoint)
    scale = 1.0 / jnp.sqrt(jnp.float32(F_IN))
    w_l = jax.random.normal(k_wl, (F_IN, F_OUT), dtype=jnp.float32) * scale
    w_r = jax.random.normal(k_wr, (F_IN, F_OUT), dtype=jnp.float32) * scale
    b = jax.random.normal(k_b, (1, F_OUT), dtype=jnp.float32) * 0.01

    # N = 256 -> tile_n=128 (2 node tiles: keeps v7x's two TCs busy),
    # tile_k=256 (full K in one long contiguous DMA).
    out = sage_conv(adj, x, w_l, w_r, b, tile_n=128, tile_k=256)
    out = jax.block_until_ready(out)

    ref = sage_conv_ref(adj, x, w_l, w_r, b)
    assert out.shape == (N, F_OUT)
    max_err = float(jnp.max(jnp.abs(out - ref)))
    # Neighbor features go through the MXU in bf16 (the intended fast path),
    # so compare against the f32 reference with a bf16-appropriate tolerance.
    assert jnp.allclose(out, ref, atol=3e-2, rtol=3e-2), (
        f"mismatch vs ref, max|err|={max_err}")

    print("KERNEL_OK")
</pallas_src>

<mosaic_0001>
module attributes {stable_mosaic.version = 11 : i64} {
  func.func @sage_kernel(%arg0: i32, %arg1: i32, %arg2: memref<128x256xbf16, #tpu.memory_space<vmem>>, %arg3: memref<256x32xbf16, #tpu.memory_space<vmem>>, %arg4: memref<128x32xf32, #tpu.memory_space<vmem>>, %arg5: memref<128x1xf32, #tpu.memory_space<vmem>>, %arg6: memref<32x128xf32, #tpu.memory_space<vmem>>, %arg7: memref<32x128xf32, #tpu.memory_space<vmem>>, %arg8: memref<1x128xf32, #tpu.memory_space<vmem>>, %arg9: memref<128x128xf32, #tpu.memory_space<vmem>>, %arg10: memref<128x32xf32, #tpu.memory_space<vmem>>) attributes {dimension_semantics = [#tpu.dimension_semantics<parallel>, #tpu.dimension_semantics<arbitrary>], iteration_bounds = array<i64: 2, 1>, scalar_prefetch = 0 : i64, scratch_operands = 1 : i64, tpu.core_type = #tpu.core_type<tc>, window_params = [{transform_indices = @transform_0, window_bounds = array<i64: 128, 256>}, {transform_indices = @transform_1, window_bounds = array<i64: 256, 32>}, {transform_indices = @transform_2, window_bounds = array<i64: 128, 32>}, {transform_indices = @transform_3, window_bounds = array<i64: 128, 1>}, {pipeline_mode = #tpu.pipeline_mode<synchronous>, transform_indices = @transform_4, window_bounds = array<i64: 32, 128>}, {pipeline_mode = #tpu.pipeline_mode<synchronous>, transform_indices = @transform_5, window_bounds = array<i64: 32, 128>}, {pipeline_mode = #tpu.pipeline_mode<synchronous>, transform_indices = @transform_6, window_bounds = array<i64: 1, 128>}, {transform_indices = @transform_7, window_bounds = array<i64: 128, 128>}]} {
    %c0_i32 = arith.constant 0 : i32
    %0 = arith.cmpi eq, %arg1, %c0_i32 : i32
    %1 = arith.extui %0 : i1 to i32
    %c0_i32_0 = arith.constant 0 : i32
    %2 = arith.cmpi ne, %1, %c0_i32_0 : i32
    scf.if %2 {
      %cst_10 = arith.constant 0.000000e+00 : f32
      %12 = vector.broadcast %cst_10 : f32 to vector<128x32xf32>
      %c0_11 = arith.constant 0 : index
      %c0_12 = arith.constant 0 : index
      %13 = vector.load %arg10[%c0_11, %c0_12] : memref<128x32xf32, #tpu.memory_space<vmem>>, vector<128x32xf32>
      tpu.vector_store %arg10[%c0_11, %c0_12], %12 {strides = array<i32>} : memref<128x32xf32, #tpu.memory_space<vmem>>, vector<128x32xf32>,
    } else {
    }
    %c0 = arith.constant 0 : index
    %c0_1 = arith.constant 0 : index
    %3 = vector.load %arg10[%c0, %c0_1] : memref<128x32xf32, #tpu.memory_space<vmem>>, vector<128x32xf32>
    %c0_2 = arith.constant 0 : index
    %c0_3 = arith.constant 0 : index
    %4 = vector.load %arg2[%c0_2, %c0_3] : memref<128x256xbf16, #tpu.memory_space<vmem>>, vector<128x256xbf16>
    %c0_4 = arith.constant 0 : index
    %c0_5 = arith.constant 0 : index
    %5 = vector.load %arg3[%c0_4, %c0_5] : memref<256x32xbf16, #tpu.memory_space<vmem>>, vector<256x32xbf16>
    %cst = arith.constant dense<0.000000e+00> : vector<128x32xf32>
    %6 = tpu.matmul %4, %5, %cst {dimension_numbers = #tpu.dot_dimension_numbers<[1], [0], [0], [1], [0, 0, 1, 1], [], []>} : vector<128x256xbf16>, vector<256x32xbf16>, vector<128x32xf32> -> vector<128x32xf32>
    %7 = arith.addf %3, %6 : vector<128x32xf32>
    %c0_6 = arith.constant 0 : index
    %c0_7 = arith.constant 0 : index
    %8 = vector.load %arg10[%c0_6, %c0_7] : memref<128x32xf32, #tpu.memory_space<vmem>>, vector<128x32xf32>
    tpu.vector_store %arg10[%c0_6, %c0_7], %7 {strides = array<i32>} : memref<128x32xf32, #tpu.memory_space<vmem>>, vector<128x32xf32>,
    %c0_i32_8 = arith.constant 0 : i32
    %9 = arith.cmpi eq, %arg1, %c0_i32_8 : i32
    %10 = arith.extui %9 : i1 to i32
    %c0_i32_9 = arith.constant 0 : i32
    %11 = arith.cmpi ne, %10, %c0_i32_9 : i32
    scf.if %11 {
      %c0_10 = arith.constant 0 : index
      %c0_11 = arith.constant 0 : index
      %12 = vector.load %arg10[%c0_10, %c0_11] : memref<128x32xf32, #tpu.memory_space<vmem>>, vector<128x32xf32>
      %c0_12 = arith.constant 0 : index
      %c0_13 = arith.constant 0 : index
      %13 = vector.load %arg5[%c0_12, %c0_13] : memref<128x1xf32, #tpu.memory_space<vmem>>, vector<128x1xf32>
      %14 = vector.broadcast %13 : vector<128x1xf32> to vector<128x32xf32>
      %15 = arith.mulf %12, %14 : vector<128x32xf32>
      %c0_14 = arith.constant 0 : index
      %c0_15 = arith.constant 0 : index
      %16 = vector.load %arg6[%c0_14, %c0_15] : memref<32x128xf32, #tpu.memory_space<vmem>>, vector<32x128xf32>
      %cst_16 = arith.constant dense<0.000000e+00> : vector<128x128xf32>
      %17 = tpu.matmul %15, %16, %cst_16 {dimension_numbers = #tpu.dot_dimension_numbers<[1], [0], [0], [1], [0, 0, 1, 1], [], []>} : vector<128x32xf32>, vector<32x128xf32>, vector<128x128xf32> -> vector<128x128xf32>
      %c0_17 = arith.constant 0 : index
      %c0_18 = arith.constant 0 : index
      %18 = vector.load %arg4[%c0_17, %c0_18] : memref<128x32xf32, #tpu.memory_space<vmem>>, vector<128x32xf32>
      %c0_19 = arith.constant 0 : index
      %c0_20 = arith.constant 0 : index
      %19 = vector.load %arg7[%c0_19, %c0_20] : memref<32x128xf32, #tpu.memory_space<vmem>>, vector<32x128xf32>
      %cst_21 = arith.constant dense<0.000000e+00> : vector<128x128xf32>
      %20 = tpu.matmul %18, %19, %cst_21 {dimension_numbers = #tpu.dot_dimension_numbers<[1], [0], [0], [1], [0, 0, 1, 1], [], []>} : vector<128x32xf32>, vector<32x128xf32>, vector<128x128xf32> -> vector<128x128xf32>
      %21 = arith.addf %17, %20 : vector<128x128xf32>
      %c0_22 = arith.constant 0 : index
      %c0_23 = arith.constant 0 : index
      %22 = vector.load %arg8[%c0_22, %c0_23] : memref<1x128xf32, #tpu.memory_space<vmem>>, vector<1x128xf32>
      %23 = vector.broadcast %22 : vector<1x128xf32> to vector<128x128xf32>
      %24 = arith.addf %21, %23 : vector<128x128xf32>
      %c0_24 = arith.constant 0 : index
      %c0_25 = arith.constant 0 : index
      %25 = vector.load %arg9[%c0_24, %c0_25] : memref<128x128xf32, #tpu.memory_space<vmem>>, vector<128x128xf32>
      tpu.vector_store %arg9[%c0_24, %c0_25], %24 {strides = array<i32>} : memref<128x128xf32, #tpu.memory_space<vmem>>, vector<128x128xf32>,
    } else {
    }
    return
  }
  func.func @transform_0(%arg0: i32, %arg1: i32) -> (i32, i32) {
    %c0_i32 = arith.constant 0 : i32
    return %arg0, %arg1 : i32, i32
  }
  func.func @transform_1(%arg0: i32, %arg1: i32) -> (i32, i32) {
    %c0_i32 = arith.constant 0 : i32
    %c0_i32_0 = arith.constant 0 : i32
    return %arg1, %c0_i32 : i32, i32
  }
  func.func @transform_2(%arg0: i32, %arg1: i32) -> (i32, i32) {
    %c0_i32 = arith.constant 0 : i32
    %c0_i32_0 = arith.constant 0 : i32
    return %arg0, %c0_i32 : i32, i32
  }
  func.func @transform_3(%arg0: i32, %arg1: i32) -> (i32, i32) {
    %c0_i32 = arith.constant 0 : i32
    %c0_i32_0 = arith.constant 0 : i32
    return %arg0, %c0_i32 : i32, i32
  }
  func.func @transform_4(%arg0: i32, %arg1: i32) -> (i32, i32) {
    %c0_i32 = arith.constant 0 : i32
    %c0_i32_0 = arith.constant 0 : i32
    %c0_i32_1 = arith.constant 0 : i32
    return %c0_i32, %c0_i32_0 : i32, i32
  }
  func.func @transform_5(%arg0: i32, %arg1: i32) -> (i32, i32) {
    %c0_i32 = arith.constant 0 : i32
    %c0_i32_0 = arith.constant 0 : i32
    %c0_i32_1 = arith.constant 0 : i32
    return %c0_i32, %c0_i32_0 : i32, i32
  }
  func.func @transform_6(%arg0: i32, %arg1: i32) -> (i32, i32) {
    %c0_i32 = arith.constant 0 : i32
    %c0_i32_0 = arith.constant 0 : i32
    %c0_i32_1 = arith.constant 0 : i32
    return %c0_i32, %c0_i32_0 : i32, i32
  }
  func.func @transform_7(%arg0: i32, %arg1: i32) -> (i32, i32) {
    %c0_i32 = arith.constant 0 : i32
    %c0_i32_0 = arith.constant 0 : i32
    return %arg0, %c0_i32 : i32, i32
  }
}

</mosaic_0001>

<llo_original>
// kernel: tpu_custom_call.1
$region0: #{tpu_custom_call.1}
  #allocation0 [shape = 'u32[]', space=smem, size = 0x4, offset = 0x4, fixed_abs, tag = 'smem constant byte address 0x4 - core index']
  #allocation1 [shape = 'u32[144,128]{1,0:T(1,128)}', space=vmem, size = 0x12000, scoped, tag = 'internal scratch']
  #allocation2 [shape = 'f32[128,32]{1,0:T(8,128)}', space=vmem, size = 0x10000, scoped, tag = 'scratch operand']
  %s0 = inlined_call_operand.vmem [shape: bf16[256,256], index: 0, kind: input, shape index: {}]
  %s1 = inlined_call_operand.vmem [shape: bf16[256,32], index: 1, kind: input, shape index: {}]
  %s2 = inlined_call_operand.vmem [shape: f32[256,32], index: 2, kind: input, shape index: {}]
  %s3 = inlined_call_operand.vmem [shape: f32[256,1], index: 3, kind: input, shape index: {}]
  %s4 = inlined_call_operand.vmem [shape: f32[32,128], index: 4, kind: input, shape index: {}]
  %s5 = inlined_call_operand.vmem [shape: f32[32,128], index: 5, kind: input, shape index: {}]
  %s6 = inlined_call_operand.vmem [shape: f32[1,128], index: 6, kind: input, shape index: {}]
  %s7 = inlined_call_operand.hbm [shape: f32[256,128], index: 7, kind: output, shape index: {}]
  %s8 = sld [smem:[#allocation0]]
  $region69: #{tpu_custom_call.1} parent=0
    _
  %s10 = ssub.s32 1, %s8
  %s11 = scalar_select 0, %s10, %s8
  $region1: #{tpu_custom_call.1} parent=0
    #allocation3 [shape = 'u8[131072]{0}', space=vmem, size = 0x20000, scoped, tag = 'output window, operand 0']
    #allocation4 [shape = 's32[2]{0}', space=sflag, size = 0x8, scoped, tag = 'scoped memory for tpu_custom_call.1']
    %12 = vsyncpa [#allocation4], 0
    %s13 = scalar_lea.sflag [#allocation4], 1
    %14 = vsyncpa %s13, 0
    loop: start=0, step=1, limit=4
    $region2: #{tpu_custom_call.1} parent=1 // loop_pre_header
      _
    $region3: #{tpu_custom_call.1} parent=1 // loop_header
      %s16 = sphi 0, %s20
      %p17 = scmp.ge.s32.totalorder %s16, 4
      %s23 = sphi 0, %s35
      %s24 = sphi 0, %s31
      %s25 = sphi 0, %s23
      %s26 = sphi 0, %s24
      %s27 = sphi 0, %s25
      %s28 = sphi 0, %s26
      %s40 = sphi 0, %s42
      %s43 = sphi 0, %s40
      %s44 = sphi 0, %s43
      %s60 = sphi 0, %s44
      %s66 = sphi 0, %s68
      %s69 = sphi 0, %s66
      %s70 = sphi 0, %s69
      %s86 = sphi 0, %s70
      %s92 = sphi 0, %s94
      %s95 = sphi 0, %s92
      %s96 = sphi 0, %s95
      %s112 = sphi 0, %s96
      %s118 = sphi 0, %s120
      %s121 = sphi 0, %s118
      %s122 = sphi 0, %s121
      %s138 = sphi 0, %s122
      %s142 = sphi 0, %s142
      %s144 = sphi 0, %s142
      %s145 = sphi 0, %s144
      %s159 = sphi 0, %s145
      %s163 = sphi 0, %s163
      %s165 = sphi 0, %s163
      %s166 = sphi 0, %s165
      %s180 = sphi 0, %s166
      %s184 = sphi 0, %s184
      %s186 = sphi 0, %s184
      %s187 = sphi 0, %s186
      %s201 = sphi 0, %s187
      %s207 = sphi 0, %s209
      %s210 = sphi 0, %s207
      %s211 = sphi 0, %s210
      %s227 = sphi 0, %s211
    $region4: #{tpu_custom_call.1} parent=1 // loop_header_branch
      %19 = sbr.rel (%p17) target = $region8
    $region5: #{tpu_custom_call.1} parent=1 // loop_body
      %s21 = ssub.s32 %s16, 1
      %s22 = ssub.s32 %s16, 2
      %s29 = sadd.s32 1, %s24
      %p30 = scmp.ge.s32.totalorder %s29, 1
      %s31 = scalar_select %p30, 0, %s29
      %s32 = sadd.s32 1, %s23
      %s33 = scalar_select %p30, %s32, %s23
      %p34 = scmp.ge.s32.totalorder %s33, 2
      %s35 = scalar_select %p34, 0, %s33
      %s36 = ssub.s32 %s23, %s35
      %s37 = ssub.s32 %s24, %s31
      %s38 = sor.u32 %s36, %s37
      %p39 = scmp.eq.s32.totalorder %s38, 0
      %s41 = sadd.s32 %s40, 1
      %s42 = scalar_select %p39, %s40, %s41
      %p45 = pneg %p39
      %p46 = scmp.eq.s32.totalorder %s16, 1
      %p47 = por %p45, %p46
      %p48 = scmp.ne.s32.totalorder %s40, %s43
      %p49 = scmp.eq.s32.totalorder %s16, 0
      %p50 = por %p48, %p49
      %p51 = scmp.ne.s32.totalorder %s40, %s43
      %p52 = scmp.eq.s32.totalorder %s21, 1
      %p53 = por %p51, %p52
      %p54 = scmp.ne.s32.totalorder %s43, %s44
      %p55 = scmp.eq.s32.totalorder %s21, 0
      %p56 = por %p54, %p55
      %p57 = scmp.ne.s32.totalorder %s43, %s44
      %p58 = scmp.eq.s32.totalorder %s22, 1
      %p59 = por %p57, %p58
      %p61 = scmp.ne.s32.totalorder %s44, %s60
      %p62 = scmp.eq.s32.totalorder %s22, 0
      %p63 = por %p61, %p62
      %s64 = ssub.s32 %s24, %s31
      %p65 = scmp.eq.s32.totalorder %s64, 0
      %s67 = sadd.s32 %s66, 1
      %s68 = scalar_select %p65, %s66, %s67
      %p71 = pneg %p65
      %p72 = scmp.eq.s32.totalorder %s16, 1
      %p73 = por %p71, %p72
      %p74 = scmp.ne.s32.totalorder %s66, %s69
      %p75 = scmp.eq.s32.totalorder %s16, 0
      %p76 = por %p74, %p75
      %p77 = scmp.ne.s32.totalorder %s66, %s69
      %p78 = scmp.eq.s32.totalorder %s21, 1
      %p79 = por %p77, %p78
      %p80 = scmp.ne.s32.totalorder %s69, %s70
      %p81 = scmp.eq.s32.totalorder %s21, 0
      %p82 = por %p80, %p81
      %p83 = scmp.ne.s32.totalorder %s69, %s70
      %p84 = scmp.eq.s32.totalorder %s22, 1
      %p85 = por %p83, %p84
      %p87 = scmp.ne.s32.totalorder %s70, %s86
      %p88 = scmp.eq.s32.totalorder %s22, 0
      %p89 = por %p87, %p88
      %s90 = ssub.s32 %s23, %s35
      %p91 = scmp.eq.s32.totalorder %s90, 0
      %s93 = sadd.s32 %s92, 1
      %s94 = scalar_select %p91, %s92, %s93
      %p97 = pneg %p91
      %p98 = scmp.eq.s32.totalorder %s16, 1
      %p99 = por %p97, %p98
      %p100 = scmp.ne.s32.totalorder %s92, %s95
      %p101 = scmp.eq.s32.totalorder %s16, 0
      %p102 = por %p100, %p101
      %p103 = scmp.ne.s32.totalorder %s92, %s95
      %p104 = scmp.eq.s32.totalorder %s21, 1
      %p105 = por %p103, %p104
      %p106 = scmp.ne.s32.totalorder %s95, %s96
      %p107 = scmp.eq.s32.totalorder %s21, 0
      %p108 = por %p106, %p107
      %p109 = scmp.ne.s32.totalorder %s95, %s96
      %p110 = scmp.eq.s32.totalorder %s22, 1
      %p111 = por %p109, %p110
      %p113 = scmp.ne.s32.totalorder %s96, %s112
      %p114 = scmp.eq.s32.totalorder %s22, 0
      %p115 = por %p113, %p114
      %s116 = ssub.s32 %s23, %s35
      %p117 = scmp.eq.s32.totalorder %s116, 0
      %s119 = sadd.s32 %s118, 1
      %s120 = scalar_select %p117, %s118, %s119
      %p123 = pneg %p117
      %p124 = scmp.eq.s32.totalorder %s16, 1
      %p125 = por %p123, %p124
      %p126 = scmp.ne.s32.totalorder %s118, %s121
      %p127 = scmp.eq.s32.totalorder %s16, 0
      %p128 = por %p126, %p127
      %p129 = scmp.ne.s32.totalorder %s118, %s121
      %p130 = scmp.eq.s32.totalorder %s21, 1
      %p131 = por %p129, %p130
      %p132 = scmp.ne.s32.totalorder %s121, %s122
      %p133 = scmp.eq.s32.totalorder %s21, 0
      %p134 = por %p132, %p133
      %p135 = scmp.ne.s32.totalorder %s121, %s122
      %p136 = scmp.eq.s32.totalorder %s22, 1
      %p137 = por %p135, %p136
      %p139 = scmp.ne.s32.totalorder %s122, %s138
      %p140 = scmp.eq.s32.totalorder %s22, 0
      %p141 = por %p139, %p140
      %s143 = sadd.s32 %s142, 1
      %p146 = scmp.eq.s32.totalorder %s16, 1
      %p147 = scmp.ne.s32.totalorder %s142, %s144
      %p148 = scmp.eq.s32.totalorder %s16, 0
      %p149 = por %p147, %p148
      %p150 = scmp.ne.s32.totalorder %s142, %s144
      %p151 = scmp.eq.s32.totalorder %s21, 1
      %p152 = por %p150, %p151
      %p153 = scmp.ne.s32.totalorder %s144, %s145
      %p154 = scmp.eq.s32.totalorder %s21, 0
      %p155 = por %p153, %p154
      %p156 = scmp.ne.s32.totalorder %s144, %s145
      %p157 = scmp.eq.s32.totalorder %s22, 1
      %p158 = por %p156, %p157
      %p160 = scmp.ne.s32.totalorder %s145, %s159
      %p161 = scmp.eq.s32.totalorder %s22, 0
      %p162 = por %p160, %p161
      %s164 = sadd.s32 %s163, 1
      %p167 = scmp.eq.s32.totalorder %s16, 1
      %p168 = scmp.ne.s32.totalorder %s163, %s165
      %p169 = scmp.eq.s32.totalorder %s16, 0
      %p170 = por %p168, %p169
      %p171 = scmp.ne.s32.totalorder %s163, %s165
      %p172 = scmp.eq.s32.totalorder %s21, 1
      %p173 = por %p171, %p172
      %p174 = scmp.ne.s32.totalorder %s165, %s166
      %p175 = scmp.eq.s32.totalorder %s21, 0
      %p176 = por %p174, %p175
      %p177 = scmp.ne.s32.totalorder %s165, %s166
      %p178 = scmp.eq.s32.totalorder %s22, 1
      %p179 = por %p177, %p178
      %p181 = scmp.ne.s32.totalorder %s166, %s180
      %p182 = scmp.eq.s32.totalorder %s22, 0
      %p183 = por %p181, %p182
      %s185 = sadd.s32 %s184, 1
      %p188 = scmp.eq.s32.totalorder %s16, 1
      %p189 = scmp.ne.s32.totalorder %s184, %s186
      %p190 = scmp.eq.s32.totalorder %s16, 0
      %p191 = por %p189, %p190
      %p192 = scmp.ne.s32.totalorder %s184, %s186
      %p193 = scmp.eq.s32.totalorder %s21, 1
      %p194 = por %p192, %p193
      %p195 = scmp.ne.s32.totalorder %s186, %s187
      %p196 = scmp.eq.s32.totalorder %s21, 0
      %p197 = por %p195, %p196
      %p198 = scmp.ne.s32.totalorder %s186, %s187
      %p199 = scmp.eq.s32.totalorder %s22, 1
      %p200 = por %p198, %p199
      %p202 = scmp.ne.s32.totalorder %s187, %s201
      %p203 = scmp.eq.s32.totalorder %s22, 0
      %p204 = por %p202, %p203
      %s205 = ssub.s32 %s23, %s35
      %p206 = scmp.eq.s32.totalorder %s205, 0
      %s208 = sadd.s32 %s207, 1
      %s209 = scalar_select %p206, %s207, %s208
      %p212 = pneg %p206
      %p213 = scmp.eq.s32.totalorder %s16, 1
      %p214 = por %p212, %p213
      %p215 = scmp.ne.s32.totalorder %s207, %s210
      %p216 = scmp.eq.s32.totalorder %s16, 0
      %p217 = por %p215, %p216
      %p218 = scmp.ne.s32.totalorder %s207, %s210
      %p219 = scmp.eq.s32.totalorder %s21, 1
      %p220 = por %p218, %p219
      %p221 = scmp.ne.s32.totalorder %s210, %s211
      %p222 = scmp.eq.s32.totalorder %s21, 0
      %p223 = por %p221, %p222
      %p224 = scmp.ne.s32.totalorder %s210, %s211
      %p225 = scmp.eq.s32.totalorder %s22, 1
      %p226 = por %p224, %p225
      %p228 = scmp.ne.s32.totalorder %s211, %s227
      %p229 = scmp.eq.s32.totalorder %s22, 0
      %p230 = por %p228, %p229
      %p231 = scmp.le.s32.totalorder 1, %s16
      %p232 = scmp.lt.s32.totalorder %s16, 3
      %p233 = pnand %p231, %p232
      %p234 = pneg %p233
      // Predicated region
      $region9: #{tpu_custom_call.1} parent=5 // pred_check
        _
      $region10: #{tpu_custom_call.1} parent=5 // pred_check_branch
        %236 = sbr.rel (%p233) target = $region12
      $region11: #{tpu_custom_call.1} parent=5 // pred_region
        %s237 = ssub.s32 %s16, 1
        // Predicated region
        $region13: #{tpu_custom_call.1} parent=11 // pred_check
          %p238 = pneg %p82
        $region14: #{tpu_custom_call.1} parent=11 // pred_check_branch
          %240 = sbr.rel (%p238) target = $region16
        $region15: #{tpu_custom_call.1} parent=11 // pred_region
          %s241 = smul.u32 32, %s26
          %p242 = scmp.lt.s32.totalorder %s241, 31
          %s243 = scalar_select %p242, %s241, 31
          %s244 = smul.addr %s243, 4
          %s245 = scalar_lea.vmem %s1, %s244
          %s246 = smul.u32 32, %s26
        $region16: #{tpu_custom_call.1} parent=11 // pred_fallthru
          _
        // Predicated region
        $region17: #{tpu_custom_call.1} parent=11 // pred_check
          %p247 = pneg %p155
        $region18: #{tpu_custom_call.1} parent=11 // pred_check_branch
          %249 = sbr.rel (%p247) target = $region20
        $region19: #{tpu_custom_call.1} parent=11 // pred_region
          _
        $region20: #{tpu_custom_call.1} parent=11 // pred_fallthru
          _
        // Predicated region
        $region21: #{tpu_custom_call.1} parent=11 // pred_check
          %p250 = pneg %p176
        $region22: #{tpu_custom_call.1} parent=11 // pred_check_branch
          %252 = sbr.rel (%p250) target = $region24
        $region23: #{tpu_custom_call.1} parent=11 // pred_region
          _
        $region24: #{tpu_custom_call.1} parent=11 // pred_fallthru
          _
        // Predicated region
        $region25: #{tpu_custom_call.1} parent=11 // pred_check
          %p253 = pneg %p197
        $region26: #{tpu_custom_call.1} parent=11 // pred_check_branch
          %255 = sbr.rel (%p253) target = $region28
        $region27: #{tpu_custom_call.1} parent=11 // pred_region
          _
        $region28: #{tpu_custom_call.1} parent=11 // pred_fallthru
          _
      $region12: #{tpu_custom_call.1} parent=5 // pred_fallthru
        _
      %p256 = scmp.lt.s32.totalorder %s16, 2
      // Predicated region
      $region29: #{tpu_custom_call.1} parent=5 // pred_check
        %p257 = pneg %p256
      $region30: #{tpu_custom_call.1} parent=5 // pred_check_branch
        %259 = sbr.rel (%p257) target = $region32
      $region31: #{tpu_custom_call.1} parent=5 // pred_region
        // Predicated region
        $region33: #{tpu_custom_call.1} parent=31 // pred_check
          %p260 = pneg %p50
        $region34: #{tpu_custom_call.1} parent=31 // pred_check_branch
          %262 = sbr.rel (%p260) target = $region36
        $region35: #{tpu_custom_call.1} parent=31 // pred_region
          %s263 = smul.u32 16, %s23
          %s264 = smul.u32 2, %s24
          %p265 = scmp.lt.s32.totalorder %s263, 31
          %s266 = scalar_select %p265, %s263, 31
          %p267 = scmp.lt.s32.totalorder %s264, 1
          %s268 = scalar_select %p267, %s264, 1
          %s269 = smul.addr %s266, 2
          %s270 = sadd.s32 %s268, %s269
          %s271 = smul.addr %s270, 4
          %s272 = scalar_lea.vmem %s0, %s271
          %s273 = smul.u32 16, %s23
          %s274 = smul.u32 2, %s24
        $region36: #{tpu_custom_call.1} parent=31 // pred_fallthru
          _
        // Predicated region
        $region37: #{tpu_custom_call.1} parent=31 // pred_check
          %p275 = pneg %p102
        $region38: #{tpu_custom_call.1} parent=31 // pred_check_branch
          %277 = sbr.rel (%p275) target = $region40
        $region39: #{tpu_custom_call.1} parent=31 // pred_region
          %s278 = smul.u32 16, %s23
          %p279 = scmp.lt.s32.totalorder %s278, 31
          %s280 = scalar_select %p279, %s278, 31
          %s281 = smul.addr %s280, 8
          %s282 = scalar_lea.vmem %s2, %s281
          %s283 = smul.u32 16, %s23
        $region40: #{tpu_custom_call.1} parent=31 // pred_fallthru
          _
        // Predicated region
        $region41: #{tpu_custom_call.1} parent=31 // pred_check
          %p284 = pneg %p128
        $region42: #{tpu_custom_call.1} parent=31 // pred_check_branch
          %286 = sbr.rel (%p284) target = $region44
        $region43: #{tpu_custom_call.1} parent=31 // pred_region
          %s287 = smul.u32 16, %s23
          %p288 = scmp.lt.s32.totalorder %s287, 31
          %s289 = scalar_select %p288, %s287, 31
          %s290 = smul.addr %s289, 8
          %s291 = scalar_lea.vmem %s3, %s290
          %s292 = smul.u32 16, %s23
        $region44: #{tpu_custom_call.1} parent=31 // pred_fallthru
          _
      $region32: #{tpu_custom_call.1} parent=5 // pred_fallthru
        _
      %p293 = scmp.le.s32.totalorder 1, %s16
      %p294 = scmp.lt.s32.totalorder %s16, 3
      %p295 = pnand %p293, %p294
      %p296 = pneg %p295
      // Predicated region
      $region45: #{tpu_custom_call.1} parent=5 // pred_check
        _
      $region46: #{tpu_custom_call.1} parent=5 // pred_check_branch
        %298 = sbr.rel (%p295) target = $region48
      $region47: #{tpu_custom_call.1} parent=5 // pred_region
        %s299 = ssub.s32 %s16, 1
        %s300 = smul.u32 16, %s25
        %s301 = smul.u32 2, %s26
        %p302 = scmp.lt.s32.totalorder %s300, 31
        %s303 = scalar_select %p302, %s300, 31
        %p304 = scmp.lt.s32.totalorder %s301, 1
        %s305 = scalar_select %p304, %s301, 1
        %s306 = smul.addr %s303, 2
        %s307 = sadd.s32 %s305, %s306
        %s308 = smul.addr %s307, 4
        %s309 = scalar_lea.vmem %s0, %s308
        %p310 = pneg %p56
        %p311 = pneg %p53
        %s312 = smul.u32 32, %s26
        %p313 = scmp.lt.s32.totalorder %s312, 31
        %s314 = scalar_select %p313, %s312, 31
        %s315 = smul.addr %s314, 4
        %s316 = scalar_lea.vmem %s1, %s315
        %p317 = pneg %p82
        %p318 = pneg %p79
        %s319 = smul.u32 16, %s25
        %p320 = scmp.lt.s32.totalorder %s319, 31
        %s321 = scalar_select %p320, %s319, 31
        %s322 = smul.addr %s321, 8
        %s323 = scalar_lea.vmem %s2, %s322
        %p324 = pneg %p108
        %p325 = pneg %p105
        %s326 = smul.u32 16, %s25
        %p327 = scmp.lt.s32.totalorder %s326, 31
        %s328 = scalar_select %p327, %s326, 31
        %s329 = smul.addr %s328, 8
        %s330 = scalar_lea.vmem %s3, %s329
        %p331 = pneg %p134
        %p332 = pneg %p131
        %p333 = pneg %p155
        %p334 = pneg %p152
        %p335 = pneg %p176
        %p336 = pneg %p173
        %p337 = pneg %p197
        %p338 = pneg %p194
        %p339 = pneg %p223
        %p340 = pneg %p220
        %s341 = sand.u32 %s210, 1
        %s342 = scalar_lea.sflag [#allocation4], %s341
        %s343 = sand.u32 %s210, 1
        %s344 = smul.addr %s343, 128
        %s345 = scalar_lea.vmem [#allocation3], %s344
        %s346 = smul.u32 16, %s25
        %s347 = smul.u32 2, %s26
        %p348 = scmp.lt.s32.totalorder %s346, 31
        %s349 = scalar_select %p348, %s346, 31
        %p350 = scmp.lt.s32.totalorder %s347, 1
        %s351 = scalar_select %p350, %s347, 1
        %s352 = smul.addr %s349, 2
        %s353 = sadd.s32 %s351, %s352
        %s354 = smul.addr %s353, 4
        %s355 = scalar_lea.vmem %s0, %s354
        %s356 = smul.u32 16, %s25
        %s357 = smul.u32 2, %s26
        %s358 = smul.u32 32, %s26
        %p359 = scmp.lt.s32.totalorder %s358, 31
        %s360 = scalar_select %p359, %s358, 31
        %s361 = smul.addr %s360, 4
        %s362 = scalar_lea.vmem %s1, %s361
        %s363 = smul.u32 32, %s26
        %s364 = smul.u32 16, %s25
        %p365 = scmp.lt.s32.totalorder %s364, 31
        %s366 = scalar_select %p365, %s364, 31
        %s367 = smul.addr %s366, 8
        %s368 = scalar_lea.vmem %s2, %s367
        %s369 = smul.u32 16, %s25
        %s370 = smul.u32 16, %s25
        %p371 = scmp.lt.s32.totalorder %s370, 31
        %s372 = scalar_select %p371, %s370, 31
        %s373 = smul.addr %s372, 8
        %s374 = scalar_lea.vmem %s3, %s373
        %s375 = smul.u32 16, %s25
        %s376 = smul.u32 16, %s25
        %p378 = scmp.eq.s32.totalorder %s26, 0
        // Predicated region
        $region49: #{tpu_custom_call.1} parent=47 // pred_check
          %p379 = pneg %p378
        $region50: #{tpu_custom_call.1} parent=47 // pred_check_branch
          %381 = sbr.rel (%p379) target = $region52
        $region51: #{tpu_custom_call.1} parent=47 // pred_region
          %vm382 = vcmask 261120
          %383 = vst.msk [vmem:[#allocation2] sm:$0xff] %vm382, 0.0
          %384 = vst.msk [vmem:[#allocation2 + $0x8] sm:$0xff] %vm382, 0.0
          %385 = vst.msk [vmem:[#allocation2 + $0x10] sm:$0xff] %vm382, 0.0
          %386 = vst.msk [vmem:[#allocation2 + $0x18] sm:$0xff] %vm382, 0.0
          %387 = vst.msk [vmem:[#allocation2 + $0x20] sm:$0xff] %vm382, 0.0
          %388 = vst.msk [vmem:[#allocation2 + $0x28] sm:$0xff] %vm382, 0.0
          %389 = vst.msk [vmem:[#allocation2 + $0x30] sm:$0xff] %vm382, 0.0
          %390 = vst.msk [vmem:[#allocation2 + $0x38] sm:$0xff] %vm382, 0.0
          %391 = vst.msk [vmem:[#allocation2 + $0x40] sm:$0xff] %vm382, 0.0
          %392 = vst.msk [vmem:[#allocation2 + $0x48] sm:$0xff] %vm382, 0.0
          %393 = vst.msk [vmem:[#allocation2 + $0x50] sm:$0xff] %vm382, 0.0
          %394 = vst.msk [vmem:[#allocation2 + $0x58] sm:$0xff] %vm382, 0.0
          %395 = vst.msk [vmem:[#allocation2 + $0x60] sm:$0xff] %vm382, 0.0
          %396 = vst.msk [vmem:[#allocation2 + $0x68] sm:$0xff] %vm382, 0.0
          %397 = vst.msk [vmem:[#allocation2 + $0x70] sm:$0xff] %vm382, 0.0
          %398 = vst.msk [vmem:[#allocation2 + $0x78] sm:$0xff] %vm382, 0.0
        $region52: #{tpu_custom_call.1} parent=47 // pred_fallthru
          _
        %v399 = vld [vmem:[#allocation2] sm:$0xff]
        %v400 = vld [vmem:[#allocation2 + $0x8] sm:$0xff]
        %v401 = vld [vmem:[#allocation2 + $0x10] sm:$0xff]
        %v402 = vld [vmem:[#allocation2 + $0x18] sm:$0xff]
        %v403 = vld [vmem:[#allocation2 + $0x20] sm:$0xff]
        %v404 = vld [vmem:[#allocation2 + $0x28] sm:$0xff]
        %v405 = vld [vmem:[#allocation2 + $0x30] sm:$0xff]
        %v406 = vld [vmem:[#allocation2 + $0x38] sm:$0xff]
        %v407 = vld [vmem:[#allocation2 + $0x40] sm:$0xff]
        %v408 = vld [vmem:[#allocation2 + $0x48] sm:$0xff]
        %v409 = vld [vmem:[#allocation2 + $0x50] sm:$0xff]
        %v410 = vld [vmem:[#allocation2 + $0x58] sm:$0xff]
        %v411 = vld [vmem:[#allocation2 + $0x60] sm:$0xff]
        %v412 = vld [vmem:[#allocation2 + $0x68] sm:$0xff]
        %v413 = vld [vmem:[#allocation2 + $0x70] sm:$0xff]
        %v414 = vld [vmem:[#allocation2 + $0x78] sm:$0xff]
        %v415 = vld [vmem:[%s355] sm:$0xff]
        %v416 = vld [vmem:[%s355 + $0x8] sm:$0xff]
        %v417 = vld [vmem:[%s355 + $0x10] sm:$0xff]
        %v418 = vld [vmem:[%s355 + $0x18] sm:$0xff]
        %v419 = vld [vmem:[%s355 + $0x20] sm:$0xff]
        %v420 = vld [vmem:[%s355 + $0x28] sm:$0xff]
        %v421 = vld [vmem:[%s355 + $0x30] sm:$0xff]
        %v422 = vld [vmem:[%s355 + $0x38] sm:$0xff]
        %v423 = vld [vmem:[%s355 + $0x40] sm:$0xff]
        %v424 = vld [vmem:[%s355 + $0x48] sm:$0xff]
        %v425 = vld [vmem:[%s355 + $0x50] sm:$0xff]
        %v426 = vld [vmem:[%s355 + $0x58] sm:$0xff]
        %v427 = vld [vmem:[%s355 + $0x60] sm:$0xff]
        %v428 = vld [vmem:[%s355 + $0x68] sm:$0xff]
        %v429 = vld [vmem:[%s355 + $0x70] sm:$0xff]
        %v430 = vld [vmem:[%s355 + $0x78] sm:$0xff]
        %v431 = vld [vmem:[%s362] sm:$0xf]
        %v432 = vld [vmem:[%s362 + $0x4] sm:$0xf]
        %v433 = vld [vmem:[%s362 + $0x8] sm:$0xf]
        %v434 = vld [vmem:[%s362 + $0xc] sm:$0xf]
        %v435 = vld [vmem:[%s362 + $0x10] sm:$0xf]
        %v436 = vld [vmem:[%s362 + $0x14] sm:$0xf]
        %v437 = vld [vmem:[%s362 + $0x18] sm:$0xf]
        %v438 = vld [vmem:[%s362 + $0x1c] sm:$0xf]
        %v439 = vld [vmem:[%s362 + $0x20] sm:$0xf]
        %v440 = vld [vmem:[%s362 + $0x24] sm:$0xf]
        %v441 = vld [vmem:[%s362 + $0x28] sm:$0xf]
        %v442 = vld [vmem:[%s362 + $0x2c] sm:$0xf]
        %v443 = vld [vmem:[%s362 + $0x30] sm:$0xf]
        %v444 = vld [vmem:[%s362 + $0x34] sm:$0xf]
        %v445 = vld [vmem:[%s362 + $0x38] sm:$0xf]
        %v446 = vld [vmem:[%s362 + $0x3c] sm:$0xf]
        %v447 = vld [vmem:[%s362 + $0x40] sm:$0xf]
        %v448 = vld [vmem:[%s362 + $0x44] sm:$0xf]
        %v449 = vld [vmem:[%s362 + $0x48] sm:$0xf]
        %v450 = vld [vmem:[%s362 + $0x4c] sm:$0xf]
        %v451 = vld [vmem:[%s362 + $0x50] sm:$0xf]
        %v452 = vld [vmem:[%s362 + $0x54] sm:$0xf]
        %v453 = vld [vmem:[%s362 + $0x58] sm:$0xf]
        %v454 = vld [vmem:[%s362 + $0x5c] sm:$0xf]
        %v455 = vld [vmem:[%s362 + $0x60] sm:$0xf]
        %v456 = vld [vmem:[%s362 + $0x64] sm:$0xf]
        %v457 = vld [vmem:[%s362 + $0x68] sm:$0xf]
        %v458 = vld [vmem:[%s362 + $0x6c] sm:$0xf]
        %v459 = vld [vmem:[%s362 + $0x70] sm:$0xf]
        %v460 = vld [vmem:[%s362 + $0x74] sm:$0xf]
        %v461 = vld [vmem:[%s362 + $0x78] sm:$0xf]
        %v462 = vld [vmem:[%s362 + $0x7c] sm:$0xf]
        %v479 = vunpack.c.l.b16 %v415
        %v480 = vunpack.c.h.b16 %v415
        %v481 = vunpack.c.l.b16 %v416
        %v482 = vunpack.c.h.b16 %v416
        %v483 = vunpack.c.l.b16 %v417
        %v484 = vunpack.c.h.b16 %v417
        %v485 = vunpack.c.l.b16 %v418
        %v486 = vunpack.c.h.b16 %v418
        %v487 = vunpack.c.l.b16 %v419
        %v488 = vunpack.c.h.b16 %v419
        %v489 = vunpack.c.l.b16 %v420
        %v490 = vunpack.c.h.b16 %v420
        %v491 = vunpack.c.l.b16 %v421
        %v492 = vunpack.c.h.b16 %v421
        %v493 = vunpack.c.l.b16 %v422
        %v494 = vunpack.c.h.b16 %v422
        %v495 = vunpack.c.l.b16 %v423
        %v496 = vunpack.c.h.b16 %v423
        %v497 = vunpack.c.l.b16 %v424
        %v498 = vunpack.c.h.b16 %v424
        %v499 = vunpack.c.l.b16 %v425
        %v500 = vunpack.c.h.b16 %v425
        %v501 = vunpack.c.l.b16 %v426
        %v502 = vunpack.c.h.b16 %v426
        %v503 = vunpack.c.l.b16 %v427
        %v504 = vunpack.c.h.b16 %v427
        %v505 = vunpack.c.l.b16 %v428
        %v506 = vunpack.c.h.b16 %v428
        %v507 = vunpack.c.l.b16 %v429
        %v508 = vunpack.c.h.b16 %v429
        %v509 = vunpack.c.l.b16 %v430
        %v510 = vunpack.c.h.b16 %v430
        %v511 = vpack.c.b16 %v481, %v479
        %v512 = vpack.c.b16 %v482, %v480
        %v513 = vpack.c.b16 %v485, %v483
        %v514 = vpack.c.b16 %v486, %v484
        %v515 = vpack.c.b16 %v489, %v487
        %v516 = vpack.c.b16 %v490, %v488
        %v517 = vpack.c.b16 %v493, %v491
        %v518 = vpack.c.b16 %v494, %v492
        %v519 = vpack.c.b16 %v497, %v495
        %v520 = vpack.c.b16 %v498, %v496
        %v521 = vpack.c.b16 %v501, %v499
        %v522 = vpack.c.b16 %v502, %v500
        %v523 = vpack.c.b16 %v505, %v503
        %v524 = vpack.c.b16 %v506, %v504
        %v525 = vpack.c.b16 %v509, %v507
        %v526 = vpack.c.b16 %v510, %v508
        %v575 = vunpack.c.l.b16 %v431
        %v576 = vunpack.c.l.b16 %v432
        %v577 = vunpack.c.l.b16 %v433
        %v578 = vunpack.c.l.b16 %v434
        %v579 = vunpack.c.l.b16 %v435
        %v580 = vunpack.c.l.b16 %v436
        %v581 = vunpack.c.l.b16 %v437
        %v582 = vunpack.c.l.b16 %v438
        %v583 = vunpack.c.l.b16 %v439
        %v584 = vunpack.c.l.b16 %v440
        %v585 = vunpack.c.l.b16 %v441
        %v586 = vunpack.c.l.b16 %v442
        %v587 = vunpack.c.l.b16 %v443
        %v588 = vunpack.c.l.b16 %v444
        %v589 = vunpack.c.l.b16 %v445
        %v590 = vunpack.c.l.b16 %v446
        %v591 = vunpack.c.l.b16 %v447
        %v592 = vunpack.c.l.b16 %v448
        %v593 = vunpack.c.l.b16 %v449
        %v594 = vunpack.c.l.b16 %v450
        %v595 = vunpack.c.l.b16 %v451
        %v596 = vunpack.c.l.b16 %v452
        %v597 = vunpack.c.l.b16 %v453
        %v598 = vunpack.c.l.b16 %v454
        %v599 = vunpack.c.l.b16 %v455
        %v600 = vunpack.c.l.b16 %v456
        %v601 = vunpack.c.l.b16 %v457
        %v602 = vunpack.c.l.b16 %v458
        %v603 = vunpack.c.l.b16 %v459
        %v604 = vunpack.c.l.b16 %v460
        %v605 = vunpack.c.l.b16 %v461
        %v606 = vunpack.c.l.b16 %v462
        %v607 = vpack.c.b16 %v576, %v575
        %v608 = vpack.c.b16 %v578, %v577
        %v609 = vpack.c.b16 %v580, %v579
        %v610 = vpack.c.b16 %v582, %v581
        %v611 = vpack.c.b16 %v584, %v583
        %v612 = vpack.c.b16 %v586, %v585
        %v613 = vpack.c.b16 %v588, %v587
        %v614 = vpack.c.b16 %v590, %v589
        %v615 = vpack.c.b16 %v592, %v591
        %v616 = vpack.c.b16 %v594, %v593
        %v617 = vpack.c.b16 %v596, %v595
        %v618 = vpack.c.b16 %v598, %v597
        %v619 = vpack.c.b16 %v600, %v599
        %v620 = vpack.c.b16 %v602, %v601
        %v621 = vpack.c.b16 %v604, %v603
        %v622 = vpack.c.b16 %v606, %v605
        %639 = vmatprep.subr.bf16.mxu0 0
        %640 = vmatpush1.bf16.msra.mxu0 %v607
        %641 = vmatprep.subr.bf16.mxu0 0
        %642 = vmatpush1.bf16.msra.mxu0 %v608
        %643 = vmatprep.subr.bf16.mxu0 0
        %644 = vmatpush1.bf16.msra.mxu0 %v609
        %645 = vmatprep.subr.bf16.mxu0 0
        %646 = vmatpush1.bf16.msra.mxu0 %v610
        %647 = vmatprep.subr.bf16.mxu0 0
        %648 = vmatpush1.bf16.msra.mxu0 %v611
        %649 = vmatprep.subr.bf16.mxu0 0
        %650 = vmatpush1.bf16.msra.mxu0 %v612
        %651 = vmatprep.subr.bf16.mxu0 0
        %652 = vmatpush1.bf16.msra.mxu0 %v613
        %653 = vmatprep.subr.bf16.mxu0 0
        %654 = vmatpush1.bf16.msra.mxu0 %v614
        %655 = vmatprep.subr.bf16.mxu0 0
        %656 = vmatpush1.bf16.msra.mxu0 %v615
        %657 = vmatprep.subr.bf16.mxu0 0
        %658 = vmatpush1.bf16.msra.mxu0 %v616
        %659 = vmatprep.subr.bf16.mxu0 0
        %660 = vmatpush1.bf16.msra.mxu0 %v617
        %661 = vmatprep.subr.bf16.mxu0 0
        %662 = vmatpush1.bf16.msra.mxu0 %v618
        %663 = vmatprep.subr.bf16.mxu0 0
        %664 = vmatpush1.bf16.msra.mxu0 %v619
        %665 = vmatprep.subr.bf16.mxu0 0
        %666 = vmatpush1.bf16.msra.mxu0 %v620
        %667 = vmatprep.subr.bf16.mxu0 0
        %668 = vmatpush1.bf16.msra.mxu0 %v621
        %669 = vmatprep.subr.bf16.mxu0 0
        %670 = vmatpush1.bf16.msra.mxu0 %v622
        %671 = vmatprep.mubr.bf16.mxu0 %v512
        %672 = vmatmul.mubr.bf16.gmra.mrb[0].mxu0 %v511
        %v673 = vpop.f32.mrb[0].mxu0
        %v674 = vadd.f32 0.0, %v673
        %v675 = vpop.f32.mrb[0].mxu0
        %v676 = vpop.f32.mrb[0].mxu0
        %v677 = vadd.f32 0.0, %v676
        %v678 = vpop.f32.mrb[0].mxu0
        %679 = vmatprep.mubr.bf16.mxu0 %v514
        %680 = vmatmul.mubr.bf16.gmra.mrb[0].mxu0 %v513
        %v681 = vpop.f32.mrb[0].mxu0
        %v682 = vadd.f32 0.0, %v681
        %v683 = vpop.f32.mrb[0].mxu0
        %v684 = vpop.f32.mrb[0].mxu0
        %v685 = vadd.f32 0.0, %v684
        %v686 = vpop.f32.mrb[0].mxu0
        %687 = vmatprep.mubr.bf16.mxu0 %v516
        %688 = vmatmul.mubr.bf16.gmra.mrb[0].mxu0 %v515
        %v689 = vpop.f32.mrb[0].mxu0
        %v690 = vadd.f32 0.0, %v689
        %v691 = vpop.f32.mrb[0].mxu0
        %v692 = vpop.f32.mrb[0].mxu0
        %v693 = vadd.f32 0.0, %v692
        %v694 = vpop.f32.mrb[0].mxu0
        %695 = vmatprep.mubr.bf16.mxu0 %v518
        %696 = vmatmul.mubr.bf16.gmra.mrb[0].mxu0 %v517
        %v697 = vpop.f32.mrb[0].mxu0
        %v698 = vadd.f32 0.0, %v697
        %v699 = vpop.f32.mrb[0].mxu0
        %v700 = vpop.f32.mrb[0].mxu0
        %v701 = vadd.f32 0.0, %v700
        %v702 = vpop.f32.mrb[0].mxu0
        %703 = vmatprep.mubr.bf16.mxu0 %v520
        %704 = vmatmul.mubr.bf16.gmra.mrb[0].mxu0 %v519
        %v705 = vpop.f32.mrb[0].mxu0
        %v706 = vadd.f32 0.0, %v705
        %v707 = vpop.f32.mrb[0].mxu0
        %v708 = vpop.f32.mrb[0].mxu0
        %v709 = vadd.f32 0.0, %v708
        %v710 = vpop.f32.mrb[0].mxu0
        %711 = vmatprep.mubr.bf16.mxu0 %v522
        %712 = vmatmul.mubr.bf16.gmra.mrb[0].mxu0 %v521
        %v713 = vpop.f32.mrb[0].mxu0
        %v714 = vadd.f32 0.0, %v713
        %v715 = vpop.f32.mrb[0].mxu0
        %v716 = vpop.f32.mrb[0].mxu0
        %v717 = vadd.f32 0.0, %v716
        %v718 = vpop.f32.mrb[0].mxu0
        %719 = vmatprep.mubr.bf16.mxu0 %v524
        %720 = vmatmul.mubr.bf16.gmra.mrb[0].mxu0 %v523
        %v721 = vpop.f32.mrb[0].mxu0
        %v722 = vadd.f32 0.0, %v721
        %v723 = vpop.f32.mrb[0].mxu0
        %v724 = vpop.f32.mrb[0].mxu0
        %v725 = vadd.f32 0.0, %v724
        %v726 = vpop.f32.mrb[0].mxu0
        %727 = vmatprep.mubr.bf16.mxu0 %v526
        %728 = vmatmul.mubr.bf16.gmra.mrb[0].mxu0 %v525
        %v729 = vpop.f32.mrb[0].mxu0
        %v730 = vadd.f32 0.0, %v729
        %v731 = vpop.f32.mrb[0].mxu0
        %v732 = vpop.f32.mrb[0].mxu0
        %v733 = vadd.f32 0.0, %v732
        %v734 = vpop.f32.mrb[0].mxu0
        %735 = vdwg.mxu0
        %v736 = vadd.f32 %v399, %v674
        %v737 = vadd.f32 %v400, %v677
        %v738 = vadd.f32 %v401, %v682
        %v739 = vadd.f32 %v402, %v685
        %v740 = vadd.f32 %v403, %v690
        %v741 = vadd.f32 %v404, %v693
        %v742 = vadd.f32 %v405, %v698
        %v743 = vadd.f32 %v406, %v701
        %v744 = vadd.f32 %v407, %v706
        %v745 = vadd.f32 %v408, %v709
        %v746 = vadd.f32 %v409, %v714
        %v747 = vadd.f32 %v410, %v717
        %v748 = vadd.f32 %v411, %v722
        %v749 = vadd.f32 %v412, %v725
        %v750 = vadd.f32 %v413, %v730
        %v751 = vadd.f32 %v414, %v733
        %vm752 = vcmask 261120
        %753 = vst.msk [vmem:[#allocation2] sm:$0xff] %vm752, %v736
        %754 = vst.msk [vmem:[#allocation2 + $0x8] sm:$0xff] %vm752, %v737
        %755 = vst.msk [vmem:[#allocation2 + $0x10] sm:$0xff] %vm752, %v738
        %756 = vst.msk [vmem:[#allocation2 + $0x18] sm:$0xff] %vm752, %v739
        %757 = vst.msk [vmem:[#allocation2 + $0x20] sm:$0xff] %vm752, %v740
        %758 = vst.msk [vmem:[#allocation2 + $0x28] sm:$0xff] %vm752, %v741
        %759 = vst.msk [vmem:[#allocation2 + $0x30] sm:$0xff] %vm752, %v742
        %760 = vst.msk [vmem:[#allocation2 + $0x38] sm:$0xff] %vm752, %v743
        %761 = vst.msk [vmem:[#allocation2 + $0x40] sm:$0xff] %vm752, %v744
        %762 = vst.msk [vmem:[#allocation2 + $0x48] sm:$0xff] %vm752, %v745
        %763 = vst.msk [vmem:[#allocation2 + $0x50] sm:$0xff] %vm752, %v746
        %764 = vst.msk [vmem:[#allocation2 + $0x58] sm:$0xff] %vm752, %v747
        %765 = vst.msk [vmem:[#allocation2 + $0x60] sm:$0xff] %vm752, %v748
        %766 = vst.msk [vmem:[#allocation2 + $0x68] sm:$0xff] %vm752, %v749
        %767 = vst.msk [vmem:[#allocation2 + $0x70] sm:$0xff] %vm752, %v750
        %768 = vst.msk [vmem:[#allocation2 + $0x78] sm:$0xff] %vm752, %v751
        // Predicated region
        $region53: #{tpu_custom_call.1} parent=47 // pred_check
          %p769 = pneg %p378
        $region54: #{tpu_custom_call.1} parent=47 // pred_check_branch
          %771 = sbr.rel (%p769) target = $region56
        $region55: #{tpu_custom_call.1} parent=47 // pred_region
          %v772 = vld [vmem:[#allocation2] sm:$0xff]
          %v773 = vld [vmem:[#allocation2 + $0x8] sm:$0xff]
          %v774 = vld [vmem:[#allocation2 + $0x10] sm:$0xff]
          %v775 = vld [vmem:[#allocation2 + $0x18] sm:$0xff]
          %v776 = vld [vmem:[#allocation2 + $0x20] sm:$0xff]
          %v777 = vld [vmem:[#allocation2 + $0x28] sm:$0xff]
          %v778 = vld [vmem:[#allocation2 + $0x30] sm:$0xff]
          %v779 = vld [vmem:[#allocation2 + $0x38] sm:$0xff]
          %v780 = vld [vmem:[#allocation2 + $0x40] sm:$0xff]
          %v781 = vld [vmem:[#allocation2 + $0x48] sm:$0xff]
          %v782 = vld [vmem:[#allocation2 + $0x50] sm:$0xff]
          %v783 = vld [vmem:[#allocation2 + $0x58] sm:$0xff]
          %v784 = vld [vmem:[#allocation2 + $0x60] sm:$0xff]
          %v785 = vld [vmem:[#allocation2 + $0x68] sm:$0xff]
          %v786 = vld [vmem:[#allocation2 + $0x70] sm:$0xff]
          %v787 = vld [vmem:[#allocation2 + $0x78] sm:$0xff]
          %v788 = vld [vmem:[%s374] sm:$0xff]
          %v789 = vld [vmem:[%s374 + $0x8] sm:$0xff]
          %v790 = vld [vmem:[%s374 + $0x10] sm:$0xff]
          %v791 = vld [vmem:[%s374 + $0x18] sm:$0xff]
          %v792 = vld [vmem:[%s374 + $0x20] sm:$0xff]
          %v793 = vld [vmem:[%s374 + $0x28] sm:$0xff]
          %v794 = vld [vmem:[%s374 + $0x30] sm:$0xff]
          %v795 = vld [vmem:[%s374 + $0x38] sm:$0xff]
          %v796 = vld [vmem:[%s374 + $0x40] sm:$0xff]
          %v797 = vld [vmem:[%s374 + $0x48] sm:$0xff]
          %v798 = vld [vmem:[%s374 + $0x50] sm:$0xff]
          %v799 = vld [vmem:[%s374 + $0x58] sm:$0xff]
          %v800 = vld [vmem:[%s374 + $0x60] sm:$0xff]
          %v801 = vld [vmem:[%s374 + $0x68] sm:$0xff]
          %v802 = vld [vmem:[%s374 + $0x70] sm:$0xff]
          %v803 = vld [vmem:[%s374 + $0x78] sm:$0xff]
          %805 = vset.pattern.permute.xlu0 0
          %806 = vperm.xlu0 %805, %v788
          %v807 = vpop.permute.xlu0 %806
          %810 = vset.pattern.permute.xlu0 0
          %811 = vperm.xlu0 %810, %v789
          %v812 = vpop.permute.xlu0 %811
          %815 = vset.pattern.permute.xlu0 0
          %816 = vperm.xlu0 %815, %v790
          %v817 = vpop.permute.xlu0 %816
          %820 = vset.pattern.permute.xlu0 0
          %821 = vperm.xlu0 %820, %v791
          %v822 = vpop.permute.xlu0 %821
          %825 = vset.pattern.permute.xlu0 0
          %826 = vperm.xlu0 %825, %v792
          %v827 = vpop.permute.xlu0 %826
          %830 = vset.pattern.permute.xlu0 0
          %831 = vperm.xlu0 %830, %v793
          %v832 = vpop.permute.xlu0 %831
          %835 = vset.pattern.permute.xlu0 0
          %836 = vperm.xlu0 %835, %v794
          %v837 = vpop.permute.xlu0 %836
          %840 = vset.pattern.permute.xlu0 0
          %841 = vperm.xlu0 %840, %v795
          %v842 = vpop.permute.xlu0 %841
          %845 = vset.pattern.permute.xlu0 0
          %846 = vperm.xlu0 %845, %v796
          %v847 = vpop.permute.xlu0 %846
          %850 = vset.pattern.permute.xlu0 0
          %851 = vperm.xlu0 %850, %v797
          %v852 = vpop.permute.xlu0 %851
          %855 = vset.pattern.permute.xlu0 0
          %856 = vperm.xlu0 %855, %v798
          %v857 = vpop.permute.xlu0 %856
          %860 = vset.pattern.permute.xlu0 0
          %861 = vperm.xlu0 %860, %v799
          %v862 = vpop.permute.xlu0 %861
          %865 = vset.pattern.permute.xlu0 0
          %866 = vperm.xlu0 %865, %v800
          %v867 = vpop.permute.xlu0 %866
          %870 = vset.pattern.permute.xlu0 0
          %871 = vperm.xlu0 %870, %v801
          %v872 = vpop.permute.xlu0 %871
          %875 = vset.pattern.permute.xlu0 0
          %876 = vperm.xlu0 %875, %v802
          %v877 = vpop.permute.xlu0 %876
          %880 = vset.pattern.permute.xlu0 0
          %881 = vperm.xlu0 %880, %v803
          %v882 = vpop.permute.xlu0 %881
          %v884 = vmul.f32 %v772, %v807
          %v885 = vmul.f32 %v773, %v812
          %v886 = vmul.f32 %v774, %v817
          %v887 = vmul.f32 %v775, %v822
          %v888 = vmul.f32 %v776, %v827
          %v889 = vmul.f32 %v777, %v832
          %v890 = vmul.f32 %v778, %v837
          %v891 = vmul.f32 %v779, %v842
          %v892 = vmul.f32 %v780, %v847
          %v893 = vmul.f32 %v781, %v852
          %v894 = vmul.f32 %v782, %v857
          %v895 = vmul.f32 %v783, %v862
          %v896 = vmul.f32 %v784, %v867
          %v897 = vmul.f32 %v785, %v872
          %v898 = vmul.f32 %v786, %v877
          %v899 = vmul.f32 %v787, %v882
          %v900 = vld [vmem:[%s4] sm:$0xff]
          %v901 = vld [vmem:[%s4 + $0x8] sm:$0xff]
          %v902 = vld [vmem:[%s4 + $0x10] sm:$0xff]
          %v903 = vld [vmem:[%s4 + $0x18] sm:$0xff]
          %v904 = vld [vmem:[%s368] sm:$0xff]
          %v905 = vld [vmem:[%s368 + $0x8] sm:$0xff]
          %v906 = vld [vmem:[%s368 + $0x10] sm:$0xff]
          %v907 = vld [vmem:[%s368 + $0x18] sm:$0xff]
          %v908 = vld [vmem:[%s368 + $0x20] sm:$0xff]
          %v909 = vld [vmem:[%s368 + $0x28] sm:$0xff]
          %v910 = vld [vmem:[%s368 + $0x30] sm:$0xff]
          %v911 = vld [vmem:[%s368 + $0x38] sm:$0xff]
          %v912 = vld [vmem:[%s368 + $0x40] sm:$0xff]
          %v913 = vld [vmem:[%s368 + $0x48] sm:$0xff]
          %v914 = vld [vmem:[%s368 + $0x50] sm:$0xff]
          %v915 = vld [vmem:[%s368 + $0x58] sm:$0xff]
          %v916 = vld [vmem:[%s368 + $0x60] sm:$0xff]
          %v917 = vld [vmem:[%s368 + $0x68] sm:$0xff]
          %v918 = vld [vmem:[%s368 + $0x70] sm:$0xff]
          %v919 = vld [vmem:[%s368 + $0x78] sm:$0xff]
          %v920 = vld [vmem:[%s5] sm:$0xff]
          %v921 = vld [vmem:[%s5 + $0x8] sm:$0xff]
          %v922 = vld [vmem:[%s5 + $0x10] sm:$0xff]
          %v923 = vld [vmem:[%s5 + $0x18] sm:$0xff]
          %v925 = vsel %vm752, %v904, 0
          %v928 = vsel %vm752, %v905, 0
          %v931 = vsel %vm752, %v906, 0
          %v934 = vsel %vm752, %v907, 0
          %v937 = vsel %vm752, %v908, 0
          %v940 = vsel %vm752, %v909, 0
          %v943 = vsel %vm752, %v910, 0
          %v946 = vsel %vm752, %v911, 0
          %v949 = vsel %vm752, %v912, 0
          %v952 = vsel %vm752, %v913, 0
          %v955 = vsel %vm752, %v914, 0
          %v958 = vsel %vm752, %v915, 0
          %v961 = vsel %vm752, %v916, 0
          %v964 = vsel %vm752, %v917, 0
          %v967 = vsel %vm752, %v918, 0
          %v970 = vsel %vm752, %v919, 0
          %972 = vmatprep.subr.mxu0 0.0
          %973 = vmatpush1.msra.mxu0 %v920
          %974 = vmatprep.subr.mxu0 0.0
          %975 = vmatpush1.msra.mxu0 %v921
          %976 = vmatprep.subr.mxu0 0.0
          %977 = vmatpush1.msra.mxu0 %v922
          %978 = vmatprep.subr.mxu0 0.0
          %979 = vmatpush1.msra.mxu0 %v923
          %980 = vmatprep.subr.mxu0 0.0
          %981 = vmatpush1.msra.mxu0 0.0
          %982 = vmatprep.subr.mxu0 0.0
          %983 = vmatpush1.msra.mxu0 0.0
          %984 = vmatprep.subr.mxu0 0.0
          %985 = vmatpush1.msra.mxu0 0.0
          %986 = vmatprep.subr.mxu0 0.0
          %987 = vmatpush1.msra.mxu0 0.0
          %988 = vmatprep.subr.mxu0 0.0
          %989 = vmatpush1.msra.mxu0 0.0
          %990 = vmatprep.subr.mxu0 0.0
          %991 = vmatpush1.msra.mxu0 0.0
          %992 = vmatprep.subr.mxu0 0.0
          %993 = vmatpush1.msra.mxu0 0.0
          %994 = vmatprep.subr.mxu0 0.0
          %995 = vmatpush1.msra.mxu0 0.0
          %996 = vmatprep.subr.mxu0 0.0
          %997 = vmatpush1.msra.mxu0 0.0
          %998 = vmatprep.subr.mxu0 0.0
          %999 = vmatpush1.msra.mxu0 0.0
          %1000 = vmatprep.subr.mxu0 0.0
          %1001 = vmatpush1.msra.mxu0 0.0
          %1002 = vmatprep.subr.mxu0 0.0
          %1003 = vmatpush1.msra.mxu0 0.0
          %1004 = vmatprep.subr.mxu0 0.0
          %1005 = vmatpush1.msra.mxu0 0.0
          %1006 = vmatprep.subr.mxu0 0.0
          %1007 = vmatpush1.msra.mxu0 0.0
          %1008 = vmatprep.subr.mxu0 0.0
          %1009 = vmatpush1.msra.mxu0 0.0
          %1010 = vmatprep.subr.mxu0 0.0
          %1011 = vmatpush1.msra.mxu0 0.0
          %1012 = vmatprep.subr.mxu0 0.0
          %1013 = vmatpush1.msra.mxu0 0.0
          %1014 = vmatprep.subr.mxu0 0.0
          %1015 = vmatpush1.msra.mxu0 0.0
          %1016 = vmatprep.subr.mxu0 0.0
          %1017 = vmatpush1.msra.mxu0 0.0
          %1018 = vmatprep.subr.mxu0 0.0
          %1019 = vmatpush1.msra.mxu0 0.0
          %1020 = vmatprep.subr.mxu0 0.0
          %1021 = vmatpush1.msra.mxu0 0.0
          %1022 = vmatprep.subr.mxu0 0.0
          %1023 = vmatpush1.msra.mxu0 0.0
          %1024 = vmatprep.subr.mxu0 0.0
          %1025 = vmatpush1.msra.mxu0 0.0
          %1026 = vmatprep.subr.mxu0 0.0
          %1027 = vmatpush1.msra.mxu0 0.0
          %1028 = vmatprep.subr.mxu0 0.0
          %1029 = vmatpush1.msra.mxu0 0.0
          %1030 = vmatprep.subr.mxu0 0.0
          %1031 = vmatpush1.msra.mxu0 0.0
          %1032 = vmatprep.subr.mxu0 0.0
          %1033 = vmatpush1.msra.mxu0 0.0
          %1034 = vmatprep.subr.mxu0 0.0
          %1035 = vmatpush1.msra.mxu0 0.0
          %1036 = vmatprep.mubr.f32.mxu0 0.0
          %1037 = vmatmul.mubr.f32.gmra.mrb[0].mxu0 %v925
          %v1038 = vpop.f32.mrb[0].mxu0
          %v1039 = vadd.f32 0.0, %v1038
          %v1040 = vpop.f32.mrb[0].mxu0
          %1041 = vmatprep.mubr.f32.mxu0 0.0
          %1042 = vmatmul.mubr.f32.gmra.mrb[0].mxu0 %v928
          %v1043 = vpop.f32.mrb[0].mxu0
          %v1044 = vadd.f32 0.0, %v1043
          %v1045 = vpop.f32.mrb[0].mxu0
          %1046 = vmatprep.mubr.f32.mxu0 0.0
          %1047 = vmatmul.mubr.f32.gmra.mrb[0].mxu0 %v931
          %v1048 = vpop.f32.mrb[0].mxu0
          %v1049 = vadd.f32 0.0, %v1048
          %v1050 = vpop.f32.mrb[0].mxu0
          %1051 = vmatprep.mubr.f32.mxu0 0.0
          %1052 = vmatmul.mubr.f32.gmra.mrb[0].mxu0 %v934
          %v1053 = vpop.f32.mrb[0].mxu0
          %v1054 = vadd.f32 0.0, %v1053
          %v1055 = vpop.f32.mrb[0].mxu0
          %1056 = vmatprep.mubr.f32.mxu0 0.0
          %1057 = vmatmul.mubr.f32.gmra.mrb[0].mxu0 %v937
          %v1058 = vpop.f32.mrb[0].mxu0
          %v1059 = vadd.f32 0.0, %v1058
          %v1060 = vpop.f32.mrb[0].mxu0
          %1061 = vmatprep.mubr.f32.mxu0 0.0
          %1062 = vmatmul.mubr.f32.gmra.mrb[0].mxu0 %v940
          %v1063 = vpop.f32.mrb[0].mxu0
          %v1064 = vadd.f32 0.0, %v1063
          %v1065 = vpop.f32.mrb[0].mxu0
          %1066 = vmatprep.mubr.f32.mxu0 0.0
          %1067 = vmatmul.mubr.f32.gmra.mrb[0].mxu0 %v943
          %v1068 = vpop.f32.mrb[0].mxu0
          %v1069 = vadd.f32 0.0, %v1068
          %v1070 = vpop.f32.mrb[0].mxu0
          %1071 = vmatprep.mubr.f32.mxu0 0.0
          %1072 = vmatmul.mubr.f32.gmra.mrb[0].mxu0 %v946
          %v1073 = vpop.f32.mrb[0].mxu0
          %v1074 = vadd.f32 0.0, %v1073
          %v1075 = vpop.f32.mrb[0].mxu0
          %1076 = vmatprep.mubr.f32.mxu0 0.0
          %1077 = vmatmul.mubr.f32.gmra.mrb[0].mxu0 %v949
          %v1078 = vpop.f32.mrb[0].mxu0
          %v1079 = vadd.f32 0.0, %v1078
          %v1080 = vpop.f32.mrb[0].mxu0
          %1081 = vmatprep.mubr.f32.mxu0 0.0
          %1082 = vmatmul.mubr.f32.gmra.mrb[0].mxu0 %v952
          %v1083 = vpop.f32.mrb[0].mxu0
          %v1084 = vadd.f32 0.0, %v1083
          %v1085 = vpop.f32.mrb[0].mxu0
          %1086 = vmatprep.mubr.f32.mxu0 0.0
          %1087 = vmatmul.mubr.f32.gmra.mrb[0].mxu0 %v955
          %v1088 = vpop.f32.mrb[0].mxu0
          %v1089 = vadd.f32 0.0, %v1088
          %v1090 = vpop.f32.mrb[0].mxu0
          %1091 = vmatprep.mubr.f32.mxu0 0.0
          %1092 = vmatmul.mubr.f32.gmra.mrb[0].mxu0 %v958
          %v1093 = vpop.f32.mrb[0].mxu0
          %v1094 = vadd.f32 0.0, %v1093
          %v1095 = vpop.f32.mrb[0].mxu0
          %1096 = vmatprep.mubr.f32.mxu0 0.0
          %1097 = vmatmul.mubr.f32.gmra.mrb[0].mxu0 %v961
          %v1098 = vpop.f32.mrb[0].mxu0
          %v1099 = vadd.f32 0.0, %v1098
          %v1100 = vpop.f32.mrb[0].mxu0
          %1101 = vmatprep.mubr.f32.mxu0 0.0
          %1102 = vmatmul.mubr.f32.gmra.mrb[0].mxu0 %v964
          %v1103 = vpop.f32.mrb[0].mxu0
          %v1104 = vadd.f32 0.0, %v1103
          %v1105 = vpop.f32.mrb[0].mxu0
          %1106 = vmatprep.mubr.f32.mxu0 0.0
          %1107 = vmatmul.mubr.f32.gmra.mrb[0].mxu0 %v967
          %v1108 = vpop.f32.mrb[0].mxu0
          %v1109 = vadd.f32 0.0, %v1108
          %v1110 = vpop.f32.mrb[0].mxu0
          %1111 = vmatprep.mubr.f32.mxu0 0.0
          %1112 = vmatmul.mubr.f32.gmra.mrb[0].mxu0 %v970
          %v1113 = vpop.f32.mrb[0].mxu0
          %v1114 = vadd.f32 0.0, %v1113
          %v1115 = vpop.f32.mrb[0].mxu0
          %1116 = vdwg.mxu0
          %v1118 = vsel %vm752, %v884, 0
          %v1121 = vsel %vm752, %v885, 0
          %v1124 = vsel %vm752, %v886, 0
          %v1127 = vsel %vm752, %v887, 0
          %v1130 = vsel %vm752, %v888, 0
          %v1133 = vsel %vm752, %v889, 0
          %v1136 = vsel %vm752, %v890, 0
          %v1139 = vsel %vm752, %v891, 0
          %v1142 = vsel %vm752, %v892, 0
          %v1145 = vsel %vm752, %v893, 0
          %v1148 = vsel %vm752, %v894, 0
          %v1151 = vsel %vm752, %v895, 0
          %v1154 = vsel %vm752, %v896, 0
          %v1157 = vsel %vm752, %v897, 0
          %v1160 = vsel %vm752, %v898, 0
          %v1163 = vsel %vm752, %v899, 0
          %1165 = vmatprep.subr.mxu0 0.0
          %1166 = vmatpush1.msra.mxu0 %v900
          %1167 = vmatprep.subr.mxu0 0.0
          %1168 = vmatpush1.msra.mxu0 %v901
          %1169 = vmatprep.subr.mxu0 0.0
          %1170 = vmatpush1.msra.mxu0 %v902
          %1171 = vmatprep.subr.mxu0 0.0
          %1172 = vmatpush1.msra.mxu0 %v903
          %1173 = vmatprep.subr.mxu0 0.0
          %1174 = vmatpush1.msra.mxu0 0.0
          %1175 = vmatprep.subr.mxu0 0.0
          %1176 = vmatpush1.msra.mxu0 0.0
          %1177 = vmatprep.subr.mxu0 0.0
          %1178 = vmatpush1.msra.mxu0 0.0
          %1179 = vmatprep.subr.mxu0 0.0
          %1180 = vmatpush1.msra.mxu0 0.0
          %1181 = vmatprep.subr.mxu0 0.0
          %1182 = vmatpush1.msra.mxu0 0.0
          %1183 = vmatprep.subr.mxu0 0.0
          %1184 = vmatpush1.msra.mxu0 0.0
          %1185 = vmatprep.subr.mxu0 0.0
          %1186 = vmatpush1.msra.mxu0 0.0
          %1187 = vmatprep.subr.mxu0 0.0
          %1188 = vmatpush1.msra.mxu0 0.0
          %1189 = vmatprep.subr.mxu0 0.0
          %1190 = vmatpush1.msra.mxu0 0.0
          %1191 = vmatprep.subr.mxu0 0.0
          %1192 = vmatpush1.msra.mxu0 0.0
          %1193 = vmatprep.subr.mxu0 0.0
          %1194 = vmatpush1.msra.mxu0 0.0
          %1195 = vmatprep.subr.mxu0 0.0
          %1196 = vmatpush1.msra.mxu0 0.0
          %1197 = vmatprep.subr.mxu0 0.0
          %1198 = vmatpush1.msra.mxu0 0.0
          %1199 = vmatprep.subr.mxu0 0.0
          %1200 = vmatpush1.msra.mxu0 0.0
          %1201 = vmatprep.subr.mxu0 0.0
          %1202 = vmatpush1.msra.mxu0 0.0
          %1203 = vmatprep.subr.mxu0 0.0
          %1204 = vmatpush1.msra.mxu0 0.0
          %1205 = vmatprep.subr.mxu0 0.0
          %1206 = vmatpush1.msra.mxu0 0.0
          %1207 = vmatprep.subr.mxu0 0.0
          %1208 = vmatpush1.msra.mxu0 0.0
          %1209 = vmatprep.subr.mxu0 0.0
          %1210 = vmatpush1.msra.mxu0 0.0
          %1211 = vmatprep.subr.mxu0 0.0
          %1212 = vmatpush1.msra.mxu0 0.0
          %1213 = vmatprep.subr.mxu0 0.0
          %1214 = vmatpush1.msra.mxu0 0.0
          %1215 = vmatprep.subr.mxu0 0.0
          %1216 = vmatpush1.msra.mxu0 0.0
          %1217 = vmatprep.subr.mxu0 0.0
          %1218 = vmatpush1.msra.mxu0 0.0
          %1219 = vmatprep.subr.mxu0 0.0
          %1220 = vmatpush1.msra.mxu0 0.0
          %1221 = vmatprep.subr.mxu0 0.0
          %1222 = vmatpush1.msra.mxu0 0.0
          %1223 = vmatprep.subr.mxu0 0.0
          %1224 = vmatpush1.msra.mxu0 0.0
          %1225 = vmatprep.subr.mxu0 0.0
          %1226 = vmatpush1.msra.mxu0 0.0
          %1227 = vmatprep.subr.mxu0 0.0
          %1228 = vmatpush1.msra.mxu0 0.0
          %1229 = vmatprep.mubr.f32.mxu0 0.0
          %1230 = vmatmul.mubr.f32.gmra.mrb[0].mxu0 %v1118
          %v1231 = vpop.f32.mrb[0].mxu0
          %v1232 = vadd.f32 %v1039, %v1231
          %v1233 = vpop.f32.mrb[0].mxu0
          %1234 = vmatprep.mubr.f32.mxu0 0.0
          %1235 = vmatmul.mubr.f32.gmra.mrb[0].mxu0 %v1121
          %v1236 = vpop.f32.mrb[0].mxu0
          %v1237 = vadd.f32 %v1044, %v1236
          %v1238 = vpop.f32.mrb[0].mxu0
          %1239 = vmatprep.mubr.f32.mxu0 0.0
          %1240 = vmatmul.mubr.f32.gmra.mrb[0].mxu0 %v1124
          %v1241 = vpop.f32.mrb[0].mxu0
          %v1242 = vadd.f32 %v1049, %v1241
          %v1243 = vpop.f32.mrb[0].mxu0
          %1244 = vmatprep.mubr.f32.mxu0 0.0
          %1245 = vmatmul.mubr.f32.gmra.mrb[0].mxu0 %v1127
          %v1246 = vpop.f32.mrb[0].mxu0
          %v1247 = vadd.f32 %v1054, %v1246
          %v1248 = vpop.f32.mrb[0].mxu0
          %1249 = vmatprep.mubr.f32.mxu0 0.0
          %1250 = vmatmul.mubr.f32.gmra.mrb[0].mxu0 %v1130
          %v1251 = vpop.f32.mrb[0].mxu0
          %v1252 = vadd.f32 %v1059, %v1251
          %v1253 = vpop.f32.mrb[0].mxu0
          %1254 = vmatprep.mubr.f32.mxu0 0.0
          %1255 = vmatmul.mubr.f32.gmra.mrb[0].mxu0 %v1133
          %v1256 = vpop.f32.mrb[0].mxu0
          %v1257 = vadd.f32 %v1064, %v1256
          %v1258 = vpop.f32.mrb[0].mxu0
          %1259 = vmatprep.mubr.f32.mxu0 0.0
          %1260 = vmatmul.mubr.f32.gmra.mrb[0].mxu0 %v1136
          %v1261 = vpop.f32.mrb[0].mxu0
          %v1262 = vadd.f32 %v1069, %v1261
          %v1263 = vpop.f32.mrb[0].mxu0
          %1264 = vmatprep.mubr.f32.mxu0 0.0
          %1265 = vmatmul.mubr.f32.gmra.mrb[0].mxu0 %v1139
          %v1266 = vpop.f32.mrb[0].mxu0
          %v1267 = vadd.f32 %v1074, %v1266
          %v1268 = vpop.f32.mrb[0].mxu0
          %1269 = vmatprep.mubr.f32.mxu0 0.0
          %1270 = vmatmul.mubr.f32.gmra.mrb[0].mxu0 %v1142
          %v1271 = vpop.f32.mrb[0].mxu0
          %v1272 = vadd.f32 %v1079, %v1271
          %v1273 = vpop.f32.mrb[0].mxu0
          %1274 = vmatprep.mubr.f32.mxu0 0.0
          %1275 = vmatmul.mubr.f32.gmra.mrb[0].mxu0 %v1145
          %v1276 = vpop.f32.mrb[0].mxu0
          %v1277 = vadd.f32 %v1084, %v1276
          %v1278 = vpop.f32.mrb[0].mxu0
          %1279 = vmatprep.mubr.f32.mxu0 0.0
          %1280 = vmatmul.mubr.f32.gmra.mrb[0].mxu0 %v1148
          %v1281 = vpop.f32.mrb[0].mxu0
          %v1282 = vadd.f32 %v1089, %v1281
          %v1283 = vpop.f32.mrb[0].mxu0
          %1284 = vmatprep.mubr.f32.mxu0 0.0
          %1285 = vmatmul.mubr.f32.gmra.mrb[0].mxu0 %v1151
          %v1286 = vpop.f32.mrb[0].mxu0
          %v1287 = vadd.f32 %v1094, %v1286
          %v1288 = vpop.f32.mrb[0].mxu0
          %1289 = vmatprep.mubr.f32.mxu0 0.0
          %1290 = vmatmul.mubr.f32.gmra.mrb[0].mxu0 %v1154
          %v1291 = vpop.f32.mrb[0].mxu0
          %v1292 = vadd.f32 %v1099, %v1291
          %v1293 = vpop.f32.mrb[0].mxu0
          %1294 = vmatprep.mubr.f32.mxu0 0.0
          %1295 = vmatmul.mubr.f32.gmra.mrb[0].mxu0 %v1157
          %v1296 = vpop.f32.mrb[0].mxu0
          %v1297 = vadd.f32 %v1104, %v1296
          %v1298 = vpop.f32.mrb[0].mxu0
          %1299 = vmatprep.mubr.f32.mxu0 0.0
          %1300 = vmatmul.mubr.f32.gmra.mrb[0].mxu0 %v1160
          %v1301 = vpop.f32.mrb[0].mxu0
          %v1302 = vadd.f32 %v1109, %v1301
          %v1303 = vpop.f32.mrb[0].mxu0
          %1304 = vmatprep.mubr.f32.mxu0 0.0
          %1305 = vmatmul.mubr.f32.gmra.mrb[0].mxu0 %v1163
          %v1306 = vpop.f32.mrb[0].mxu0
          %v1307 = vadd.f32 %v1114, %v1306
          %v1308 = vpop.f32.mrb[0].mxu0
          %1309 = vdwg.mxu0
          %v1310 = vld [vmem:[%s6] sm:$0x1]
          %v1312 = vlaneseq
          %v1313 = vshrl.u32 %v1312, 7
          %v1314 = vsub.s32 0, %v1313
          %v1315 = vrot.slane %v1310, %v1314
          %v1317 = vadd.f32 %v1232, %v1315
          %v1318 = vadd.f32 %v1237, %v1315
          %v1319 = vadd.f32 %v1242, %v1315
          %v1320 = vadd.f32 %v1247, %v1315
          %v1321 = vadd.f32 %v1252, %v1315
          %v1322 = vadd.f32 %v1257, %v1315
          %v1323 = vadd.f32 %v1262, %v1315
          %v1324 = vadd.f32 %v1267, %v1315
          %v1325 = vadd.f32 %v1272, %v1315
          %v1326 = vadd.f32 %v1277, %v1315
          %v1327 = vadd.f32 %v1282, %v1315
          %v1328 = vadd.f32 %v1287, %v1315
          %v1329 = vadd.f32 %v1292, %v1315
          %v1330 = vadd.f32 %v1297, %v1315
          %v1331 = vadd.f32 %v1302, %v1315
          %v1332 = vadd.f32 %v1307, %v1315
          %1333 = vst [vmem:[%s345] sm:$0xff] %v1317
          %1334 = vst [vmem:[%s345 + $0x8] sm:$0xff] %v1318
          %1335 = vst [vmem:[%s345 + $0x10] sm:$0xff] %v1319
          %1336 = vst [vmem:[%s345 + $0x18] sm:$0xff] %v1320
          %1337 = vst [vmem:[%s345 + $0x20] sm:$0xff] %v1321
          %1338 = vst [vmem:[%s345 + $0x28] sm:$0xff] %v1322
          %1339 = vst [vmem:[%s345 + $0x30] sm:$0xff] %v1323
          %1340 = vst [vmem:[%s345 + $0x38] sm:$0xff] %v1324
          %1341 = vst [vmem:[%s345 + $0x40] sm:$0xff] %v1325
          %1342 = vst [vmem:[%s345 + $0x48] sm:$0xff] %v1326
          %1343 = vst [vmem:[%s345 + $0x50] sm:$0xff] %v1327
          %1344 = vst [vmem:[%s345 + $0x58] sm:$0xff] %v1328
          %1345 = vst [vmem:[%s345 + $0x60] sm:$0xff] %v1329
          %1346 = vst [vmem:[%s345 + $0x68] sm:$0xff] %v1330
          %1347 = vst [vmem:[%s345 + $0x70] sm:$0xff] %v1331
          %1348 = vst [vmem:[%s345 + $0x78] sm:$0xff] %v1332
        $region56: #{tpu_custom_call.1} parent=47 // pred_fallthru
          _
        %s1349 = sand.u32 %s210, 1
        %s1350 = scalar_lea.sflag [#allocation4], %s1349
        %s1351 = sand.u32 %s210, 1
        %s1352 = smul.addr %s1351, 128
        %s1353 = scalar_lea.vmem [#allocation3], %s1352
        // Predicated region
        $region57: #{tpu_custom_call.1} parent=47 // pred_check
          %p1354 = pneg %p220
        $region58: #{tpu_custom_call.1} parent=47 // pred_check_branch
          %1356 = sbr.rel (%p1354) target = $region60
        $region59: #{tpu_custom_call.1} parent=47 // pred_region
          %s1357 = smul.u32 16, %s25
          %s1359 = ssub.s32 2048, 2048
          %1360 = vsyncadd %s1350, %s1359
          %s1361 = smul.addr %s1357, 128
          %s1362 = scalar_lea.hbm %s7, %s1361
          %s1363 = sshll.u32 %s1353, 4
          %s1364 = int_to_ptr.vmem [resolvable:$true] %s1363
          %1369 = dma.vmem_to_hbm [thread:$0]  %s1364, 2048, %s1362, %s1350, 128, 128, 8
        $region60: #{tpu_custom_call.1} parent=47 // pred_fallthru
          _
      $region48: #{tpu_custom_call.1} parent=5 // pred_fallthru
        _
      %p1370 = scmp.le.s32.totalorder 2, %s16
      // Predicated region
      $region61: #{tpu_custom_call.1} parent=5 // pred_check
        %p1371 = pneg %p1370
      $region62: #{tpu_custom_call.1} parent=5 // pred_check_branch
        %1373 = sbr.rel (%p1371) target = $region64
      $region63: #{tpu_custom_call.1} parent=5 // pred_region
        %s1374 = ssub.s32 %s16, 2
        // Predicated region
        $region65: #{tpu_custom_call.1} parent=63 // pred_check
          %p1375 = pneg %p226
        $region66: #{tpu_custom_call.1} parent=63 // pred_check_branch
          %1377 = sbr.rel (%p1375) target = $region68
        $region67: #{tpu_custom_call.1} parent=63 // pred_region
          %s1378 = sand.u32 %s211, 1
          %s1379 = scalar_lea.sflag [#allocation4], %s1378
          %s1380 = sand.u32 %s211, 1
          %s1381 = smul.addr %s1380, 128
          %s1382 = scalar_lea.vmem [#allocation3], %s1381
          %1383 = dma.done %s1379, 2048
        $region68: #{tpu_custom_call.1} parent=63 // pred_fallthru
          _
      $region64: #{tpu_custom_call.1} parent=5 // pred_fallthru
        _
    $region6: #{tpu_custom_call.1} parent=1 // loop_footer
      %s20 = sadd.s32 1, %s16
    $region7: #{tpu_custom_call.1} parent=1 // loop_footer_branch
      %15 = sbr.rel target = $region3
    $region8: #{tpu_custom_call.1} parent=1 // loop_exit
      _
    %1384 = vsyncpa [#allocation4], 1
    %s1385 = scalar_lea.sflag [#allocation4], 1
    %1386 = vsyncpa %s1385, 1

</llo_original>
